<compile_context>
chip_gen: v7x
topology: tpu7x:2x2x1
jax: 0.10.0
libtpu: 0.0.40
codegen_flags: <defaults>
</compile_context>

<pallas_src>
import functools

import jax
import jax.numpy as jnp
from jax.experimental import pallas as pl
from jax.experimental.pallas import tpu as pltpu


def _round_up(n, m):
    return ((n + m - 1) // m) * m


def _mlp_kernel(x_ref, w1_ref, b1_ref, w2_ref, b2_ref, o_ref):
    # In-kernel bf16 downcast of the streamed activations (hidden under DMA).
    x_bf = x_ref[...].astype(jnp.bfloat16)
    # fc1: (tb, 784)bf16 @ (784, H)bf16 -> (tb, H), f32 accumulation on MXU.
    h = jnp.dot(x_bf, w1_ref[...], preferred_element_type=jnp.float32)
    h = jnp.maximum(h + b1_ref[...], 0.0)          # bias + ReLU in f32
    # fc2: bf16 downcast of h feeds the MXU; accumulate in f32.
    out = jnp.dot(h.astype(w2_ref.dtype), w2_ref[...],
                  preferred_element_type=jnp.float32)
    o_ref[...] = (out + b2_ref[...]).astype(o_ref.dtype)


def prepare_params(w1, b1, w2, b2):
    """One-time parameter prep, hoisted out of the per-call path.

    Returns (w1_bf16, b1_(1,H)_f32, w2_bf16, b2_(1,C)_f32). Weights are the
    transposed-vs-PyTorch layout: w1 is (784, H), w2 is (H, C).
    """
    return (w1.astype(jnp.bfloat16),
            b1.reshape(1, -1).astype(jnp.float32),
            w2.astype(jnp.bfloat16),
            b2.reshape(1, -1).astype(jnp.float32))


@functools.partial(jax.jit, static_argnames=("block_b",))
def neural_net_forward(x, w1_bf, b1_2d, w2_bf, b2_2d, *, block_b=1024):
    """Pallas forward of NeuralNet: reshape(-1, 784) -> fc1 -> ReLU -> fc2.

    block_b: batch tile upper bound (multiple of 8). It is automatically
    capped so the grid has at least 2 steps (v7x two-TensorCore sharding).
    """
    x2d = x.reshape(-1, 28 * 28)                   # f32, no wrapper-side cast
    B, D = x2d.shape
    H = w1_bf.shape[1]
    C = w2_bf.shape[1]

    # Pick the effective batch tile: never larger than the batch (rounded to
    # the 8-row sublane tile), and keep >= 2 grid steps when B allows it so
    # the "parallel" axis can be sharded across both v7x TensorCores.
    bb = min(block_b, _round_up(B, 8))
    if B > 8:
        bb = min(bb, _round_up(pl.cdiv(B, 2), 8))
    bb = max(8, (bb // 8) * 8)
    n_blocks = pl.cdiv(B, bb)                      # partial trailing block OK

    out = pl.pallas_call(
        _mlp_kernel,
        out_shape=jax.ShapeDtypeStruct((B, C), jnp.float32),
        grid_spec=pl.GridSpec(
            grid=(n_blocks,),
            in_specs=[
                # x is the only streamed operand; weights/biases use a
                # constant index_map so they stay resident in VMEM.
                pl.BlockSpec((bb, D), lambda i: (i, 0)),
                pl.BlockSpec((D, H), lambda i: (0, 0)),
                pl.BlockSpec((1, H), lambda i: (0, 0)),
                pl.BlockSpec((H, C), lambda i: (0, 0)),
                pl.BlockSpec((1, C), lambda i: (0, 0)),
            ],
            out_specs=pl.BlockSpec((bb, C), lambda i: (i, 0)),
        ),
        compiler_params=pltpu.CompilerParams(
            dimension_semantics=("parallel",)),    # megacore-shard the batch
    )(x2d, w1_bf, b1_2d, w2_bf, b2_2d)

    return out


def init_params(key, input_size, hidden_size, num_classes, dtype=jnp.float32):
    """Deterministic init mimicking nn.Linear default (uniform +-1/sqrt(fan_in))."""
    k1, k2, k3, k4 = jax.random.split(key, 4)
    lim1 = 1.0 / jnp.sqrt(input_size)
    lim2 = 1.0 / jnp.sqrt(hidden_size)
    w1 = jax.random.uniform(k1, (input_size, hidden_size), dtype, -lim1, lim1)
    b1 = jax.random.uniform(k2, (hidden_size,), dtype, -lim1, lim1)
    w2 = jax.random.uniform(k3, (hidden_size, num_classes), dtype, -lim2, lim2)
    b2 = jax.random.uniform(k4, (num_classes,), dtype, -lim2, lim2)
    return w1, b1, w2, b2


if __name__ == "__main__":
    input_size = 28 * 28   # fixed by the forward's reshape(-1, 28*28)
    hidden_size = 32
    num_classes = 10
    batch = 37             # ragged on purpose: exercises the partial-block path

    key = jax.random.PRNGKey(0)
    kx, kp = jax.random.split(key)
    # MNIST-style NCHW input (B, 1, 28, 28); forward flattens it to (B, 784).
    x = jax.random.normal(kx, (batch, 1, 28, 28), dtype=jnp.float32)
    w1, b1, w2, b2 = init_params(kp, input_size, hidden_size, num_classes)

    # One-time parameter prep (bf16 weights, (1, N) f32 biases).
    params = prepare_params(w1, b1, w2, b2)

    # Default block_b=1024 gets capped to 24 here -> 2 grid steps, with a
    # partial trailing block (rows 24..36), exercising the clipped writeback.
    out = neural_net_forward(x, *params)
    out = jax.block_until_ready(out)

    # Pure-JAX f32 reference of the same math (tolerance loosened for the
    # bf16 weights / in-kernel bf16 activation cast; accumulation is f32).
    xf = x.reshape(-1, 28 * 28)
    ref = jnp.maximum(xf @ w1 + b1, 0.0) @ w2 + b2
    assert out.shape == (batch, num_classes), out.shape
    assert jnp.allclose(out, ref, atol=5e-2, rtol=5e-2), (
        float(jnp.max(jnp.abs(out - ref))))

    print("KERNEL_OK")
</pallas_src>

<mosaic_0001>
module attributes {stable_mosaic.version = 11 : i64} {
  func.func @_mlp_kernel(%arg0: i32, %arg1: memref<24x784xf32, #tpu.memory_space<vmem>>, %arg2: memref<784x32xbf16, #tpu.memory_space<vmem>>, %arg3: memref<1x32xf32, #tpu.memory_space<vmem>>, %arg4: memref<32x10xbf16, #tpu.memory_space<vmem>>, %arg5: memref<1x10xf32, #tpu.memory_space<vmem>>, %arg6: memref<24x10xf32, #tpu.memory_space<vmem>>) attributes {dimension_semantics = [#tpu.dimension_semantics<parallel>], iteration_bounds = array<i64: 2>, scalar_prefetch = 0 : i64, scratch_operands = 0 : i64, tpu.core_type = #tpu.core_type<tc>, window_params = [{transform_indices = @transform_0, window_bounds = array<i64: 24, 784>}, {pipeline_mode = #tpu.pipeline_mode<synchronous>, transform_indices = @transform_1, window_bounds = array<i64: 784, 32>}, {pipeline_mode = #tpu.pipeline_mode<synchronous>, transform_indices = @transform_2, window_bounds = array<i64: 1, 32>}, {pipeline_mode = #tpu.pipeline_mode<synchronous>, transform_indices = @transform_3, window_bounds = array<i64: 32, 10>}, {pipeline_mode = #tpu.pipeline_mode<synchronous>, transform_indices = @transform_4, window_bounds = array<i64: 1, 10>}, {transform_indices = @transform_5, window_bounds = array<i64: 24, 10>}]} {
    %c0 = arith.constant 0 : index
    %c0_0 = arith.constant 0 : index
    %0 = vector.load %arg1[%c0, %c0_0] : memref<24x784xf32, #tpu.memory_space<vmem>>, vector<24x784xf32>
    %1 = arith.truncf %0 : vector<24x784xf32> to vector<24x784xbf16>
    %c0_1 = arith.constant 0 : index
    %c0_2 = arith.constant 0 : index
    %2 = vector.load %arg2[%c0_1, %c0_2] : memref<784x32xbf16, #tpu.memory_space<vmem>>, vector<784x32xbf16>
    %cst = arith.constant dense<0.000000e+00> : vector<24x32xf32>
    %3 = tpu.matmul %1, %2, %cst {dimension_numbers = #tpu.dot_dimension_numbers<[1], [0], [0], [1], [0, 0, 1, 1], [], []>} : vector<24x784xbf16>, vector<784x32xbf16>, vector<24x32xf32> -> vector<24x32xf32>
    %c0_3 = arith.constant 0 : index
    %c0_4 = arith.constant 0 : index
    %4 = vector.load %arg3[%c0_3, %c0_4] : memref<1x32xf32, #tpu.memory_space<vmem>>, vector<1x32xf32>
    %5 = vector.broadcast %4 : vector<1x32xf32> to vector<24x32xf32>
    %6 = arith.addf %3, %5 : vector<24x32xf32>
    %cst_5 = arith.constant 0.000000e+00 : f32
    %7 = vector.broadcast %cst_5 : f32 to vector<24x32xf32>
    %8 = arith.maximumf %6, %7 : vector<24x32xf32>
    %9 = arith.truncf %8 : vector<24x32xf32> to vector<24x32xbf16>
    %c0_6 = arith.constant 0 : index
    %c0_7 = arith.constant 0 : index
    %10 = vector.load %arg4[%c0_6, %c0_7] : memref<32x10xbf16, #tpu.memory_space<vmem>>, vector<32x10xbf16>
    %cst_8 = arith.constant dense<0.000000e+00> : vector<24x10xf32>
    %11 = tpu.matmul %9, %10, %cst_8 {dimension_numbers = #tpu.dot_dimension_numbers<[1], [0], [0], [1], [0, 0, 1, 1], [], []>} : vector<24x32xbf16>, vector<32x10xbf16>, vector<24x10xf32> -> vector<24x10xf32>
    %c0_9 = arith.constant 0 : index
    %c0_10 = arith.constant 0 : index
    %12 = vector.load %arg5[%c0_9, %c0_10] : memref<1x10xf32, #tpu.memory_space<vmem>>, vector<1x10xf32>
    %13 = vector.broadcast %12 : vector<1x10xf32> to vector<24x10xf32>
    %14 = arith.addf %11, %13 : vector<24x10xf32>
    %c0_11 = arith.constant 0 : index
    %c0_12 = arith.constant 0 : index
    %15 = vector.load %arg6[%c0_11, %c0_12] : memref<24x10xf32, #tpu.memory_space<vmem>>, vector<24x10xf32>
    tpu.vector_store %arg6[%c0_11, %c0_12], %14 {strides = array<i32>} : memref<24x10xf32, #tpu.memory_space<vmem>>, vector<24x10xf32>,
    return
  }
  func.func @transform_0(%arg0: i32) -> (i32, i32) {
    %c0_i32 = arith.constant 0 : i32
    %c0_i32_0 = arith.constant 0 : i32
    return %arg0, %c0_i32 : i32, i32
  }
  func.func @transform_1(%arg0: i32) -> (i32, i32) {
    %c0_i32 = arith.constant 0 : i32
    %c0_i32_0 = arith.constant 0 : i32
    %c0_i32_1 = arith.constant 0 : i32
    return %c0_i32, %c0_i32_0 : i32, i32
  }
  func.func @transform_2(%arg0: i32) -> (i32, i32) {
    %c0_i32 = arith.constant 0 : i32
    %c0_i32_0 = arith.constant 0 : i32
    %c0_i32_1 = arith.constant 0 : i32
    return %c0_i32, %c0_i32_0 : i32, i32
  }
  func.func @transform_3(%arg0: i32) -> (i32, i32) {
    %c0_i32 = arith.constant 0 : i32
    %c0_i32_0 = arith.constant 0 : i32
    %c0_i32_1 = arith.constant 0 : i32
    return %c0_i32, %c0_i32_0 : i32, i32
  }
  func.func @transform_4(%arg0: i32) -> (i32, i32) {
    %c0_i32 = arith.constant 0 : i32
    %c0_i32_0 = arith.constant 0 : i32
    %c0_i32_1 = arith.constant 0 : i32
    return %c0_i32, %c0_i32_0 : i32, i32
  }
  func.func @transform_5(%arg0: i32) -> (i32, i32) {
    %c0_i32 = arith.constant 0 : i32
    %c0_i32_0 = arith.constant 0 : i32
    return %arg0, %c0_i32 : i32, i32
  }
}

</mosaic_0001>

<llo_original>
// kernel: neural_net_forward.1
$region0: #{neural_net_forward.1}
  #allocation0 [shape = 'u32[]', space=smem, size = 0x4, offset = 0x4, fixed_abs, tag = 'smem constant byte address 0x4 - core index']
  #allocation1 [shape = 'u32[144,128]{1,0:T(1,128)}', space=vmem, size = 0x12000, scoped, tag = 'internal scratch']
  %s0 = inlined_call_operand.vmem [shape: f32[37,784], index: 0, kind: input, shape index: {}]
  %s1 = inlined_call_operand.vmem [shape: bf16[784,32], index: 1, kind: input, shape index: {}]
  %s2 = inlined_call_operand.vmem [shape: f32[1,32], index: 2, kind: input, shape index: {}]
  %s3 = inlined_call_operand.vmem [shape: bf16[32,10], index: 3, kind: input, shape index: {}]
  %s4 = inlined_call_operand.vmem [shape: f32[1,10], index: 4, kind: input, shape index: {}]
  %s5 = inlined_call_operand.vmem [shape: f32[37,10], index: 5, kind: output, shape index: {}]
  %s6 = sld [smem:[#allocation0]]
  $region101: #{neural_net_forward.1} parent=0
    _
  %s8 = ssub.s32 1, %s6
  %s9 = scalar_select 0, %s8, %s6
  $region1: #{neural_net_forward.1} parent=0
    #allocation2 [shape = 'u8[24576]{0}', space=vmem, size = 0x6000, scoped, tag = 'output window, operand 0']
    loop: start=0, step=1, limit=4
    $region2: #{neural_net_forward.1} parent=1 // loop_pre_header
      _
    $region3: #{neural_net_forward.1} parent=1 // loop_header
      %s11 = sphi 0, %s15
      %p12 = scmp.ge.s32.totalorder %s11, 4
      %s21 = sphi 0, %s23
      %s24 = sphi 0, %s21
      %s25 = sphi 0, %s24
      %s41 = sphi 0, %s25
      %s45 = sphi 0, %s45
      %s47 = sphi 0, %s45
      %s48 = sphi 0, %s47
      %s62 = sphi 0, %s48
      %s66 = sphi 0, %s66
      %s68 = sphi 0, %s66
      %s69 = sphi 0, %s68
      %s83 = sphi 0, %s69
      %s87 = sphi 0, %s87
      %s89 = sphi 0, %s87
      %s90 = sphi 0, %s89
      %s104 = sphi 0, %s90
      %s108 = sphi 0, %s108
      %s110 = sphi 0, %s108
      %s111 = sphi 0, %s110
      %s125 = sphi 0, %s111
      %s131 = sphi 0, %s133
      %s134 = sphi 0, %s131
      %s135 = sphi 0, %s134
      %s151 = sphi 0, %s135
    $region4: #{neural_net_forward.1} parent=1 // loop_header_branch
      %14 = sbr.rel (%p12) target = $region8
    $region5: #{neural_net_forward.1} parent=1 // loop_body
      %s16 = ssub.s32 %s11, 1
      %s17 = ssub.s32 %s11, 2
      %s18 = sadd.s32 %s11, 1
      %s19 = ssub.s32 %s11, %s18
      %p20 = scmp.eq.s32.totalorder %s19, 0
      %s22 = sadd.s32 %s21, 1
      %s23 = scalar_select %p20, %s21, %s22
      %p26 = pneg %p20
      %p27 = scmp.eq.s32.totalorder %s11, 1
      %p28 = por %p26, %p27
      %p29 = scmp.ne.s32.totalorder %s21, %s24
      %p30 = scmp.eq.s32.totalorder %s11, 0
      %p31 = por %p29, %p30
      %p32 = scmp.ne.s32.totalorder %s21, %s24
      %p33 = scmp.eq.s32.totalorder %s16, 1
      %p34 = por %p32, %p33
      %p35 = scmp.ne.s32.totalorder %s24, %s25
      %p36 = scmp.eq.s32.totalorder %s16, 0
      %p37 = por %p35, %p36
      %p38 = scmp.ne.s32.totalorder %s24, %s25
      %p39 = scmp.eq.s32.totalorder %s17, 1
      %p40 = por %p38, %p39
      %p42 = scmp.ne.s32.totalorder %s25, %s41
      %p43 = scmp.eq.s32.totalorder %s17, 0
      %p44 = por %p42, %p43
      %s46 = sadd.s32 %s45, 1
      %p49 = scmp.eq.s32.totalorder %s11, 1
      %p50 = scmp.ne.s32.totalorder %s45, %s47
      %p51 = scmp.eq.s32.totalorder %s11, 0
      %p52 = por %p50, %p51
      %p53 = scmp.ne.s32.totalorder %s45, %s47
      %p54 = scmp.eq.s32.totalorder %s16, 1
      %p55 = por %p53, %p54
      %p56 = scmp.ne.s32.totalorder %s47, %s48
      %p57 = scmp.eq.s32.totalorder %s16, 0
      %p58 = por %p56, %p57
      %p59 = scmp.ne.s32.totalorder %s47, %s48
      %p60 = scmp.eq.s32.totalorder %s17, 1
      %p61 = por %p59, %p60
      %p63 = scmp.ne.s32.totalorder %s48, %s62
      %p64 = scmp.eq.s32.totalorder %s17, 0
      %p65 = por %p63, %p64
      %s67 = sadd.s32 %s66, 1
      %p70 = scmp.eq.s32.totalorder %s11, 1
      %p71 = scmp.ne.s32.totalorder %s66, %s68
      %p72 = scmp.eq.s32.totalorder %s11, 0
      %p73 = por %p71, %p72
      %p74 = scmp.ne.s32.totalorder %s66, %s68
      %p75 = scmp.eq.s32.totalorder %s16, 1
      %p76 = por %p74, %p75
      %p77 = scmp.ne.s32.totalorder %s68, %s69
      %p78 = scmp.eq.s32.totalorder %s16, 0
      %p79 = por %p77, %p78
      %p80 = scmp.ne.s32.totalorder %s68, %s69
      %p81 = scmp.eq.s32.totalorder %s17, 1
      %p82 = por %p80, %p81
      %p84 = scmp.ne.s32.totalorder %s69, %s83
      %p85 = scmp.eq.s32.totalorder %s17, 0
      %p86 = por %p84, %p85
      %s88 = sadd.s32 %s87, 1
      %p91 = scmp.eq.s32.totalorder %s11, 1
      %p92 = scmp.ne.s32.totalorder %s87, %s89
      %p93 = scmp.eq.s32.totalorder %s11, 0
      %p94 = por %p92, %p93
      %p95 = scmp.ne.s32.totalorder %s87, %s89
      %p96 = scmp.eq.s32.totalorder %s16, 1
      %p97 = por %p95, %p96
      %p98 = scmp.ne.s32.totalorder %s89, %s90
      %p99 = scmp.eq.s32.totalorder %s16, 0
      %p100 = por %p98, %p99
      %p101 = scmp.ne.s32.totalorder %s89, %s90
      %p102 = scmp.eq.s32.totalorder %s17, 1
      %p103 = por %p101, %p102
      %p105 = scmp.ne.s32.totalorder %s90, %s104
      %p106 = scmp.eq.s32.totalorder %s17, 0
      %p107 = por %p105, %p106
      %s109 = sadd.s32 %s108, 1
      %p112 = scmp.eq.s32.totalorder %s11, 1
      %p113 = scmp.ne.s32.totalorder %s108, %s110
      %p114 = scmp.eq.s32.totalorder %s11, 0
      %p115 = por %p113, %p114
      %p116 = scmp.ne.s32.totalorder %s108, %s110
      %p117 = scmp.eq.s32.totalorder %s16, 1
      %p118 = por %p116, %p117
      %p119 = scmp.ne.s32.totalorder %s110, %s111
      %p120 = scmp.eq.s32.totalorder %s16, 0
      %p121 = por %p119, %p120
      %p122 = scmp.ne.s32.totalorder %s110, %s111
      %p123 = scmp.eq.s32.totalorder %s17, 1
      %p124 = por %p122, %p123
      %p126 = scmp.ne.s32.totalorder %s111, %s125
      %p127 = scmp.eq.s32.totalorder %s17, 0
      %p128 = por %p126, %p127
      %s129 = ssub.s32 %s11, %s18
      %p130 = scmp.eq.s32.totalorder %s129, 0
      %s132 = sadd.s32 %s131, 1
      %s133 = scalar_select %p130, %s131, %s132
      %p136 = pneg %p130
      %p137 = scmp.eq.s32.totalorder %s11, 1
      %p138 = por %p136, %p137
      %p139 = scmp.ne.s32.totalorder %s131, %s134
      %p140 = scmp.eq.s32.totalorder %s11, 0
      %p141 = por %p139, %p140
      %p142 = scmp.ne.s32.totalorder %s131, %s134
      %p143 = scmp.eq.s32.totalorder %s16, 1
      %p144 = por %p142, %p143
      %p145 = scmp.ne.s32.totalorder %s134, %s135
      %p146 = scmp.eq.s32.totalorder %s16, 0
      %p147 = por %p145, %p146
      %p148 = scmp.ne.s32.totalorder %s134, %s135
      %p149 = scmp.eq.s32.totalorder %s17, 1
      %p150 = por %p148, %p149
      %p152 = scmp.ne.s32.totalorder %s135, %s151
      %p153 = scmp.eq.s32.totalorder %s17, 0
      %p154 = por %p152, %p153
      %p155 = scmp.le.s32.totalorder 1, %s11
      %p156 = scmp.lt.s32.totalorder %s11, 3
      %p157 = pnand %p155, %p156
      %p158 = pneg %p157
      // Predicated region
      $region9: #{neural_net_forward.1} parent=5 // pred_check
        _
      $region10: #{neural_net_forward.1} parent=5 // pred_check_branch
        %160 = sbr.rel (%p157) target = $region12
      $region11: #{neural_net_forward.1} parent=5 // pred_region
        %s161 = ssub.s32 %s11, 1
        // Predicated region
        $region13: #{neural_net_forward.1} parent=11 // pred_check
          %p162 = pneg %p58
        $region14: #{neural_net_forward.1} parent=11 // pred_check_branch
          %164 = sbr.rel (%p162) target = $region16
        $region15: #{neural_net_forward.1} parent=11 // pred_region
          _
        $region16: #{neural_net_forward.1} parent=11 // pred_fallthru
          _
        // Predicated region
        $region17: #{neural_net_forward.1} parent=11 // pred_check
          %p165 = pneg %p79
        $region18: #{neural_net_forward.1} parent=11 // pred_check_branch
          %167 = sbr.rel (%p165) target = $region20
        $region19: #{neural_net_forward.1} parent=11 // pred_region
          _
        $region20: #{neural_net_forward.1} parent=11 // pred_fallthru
          _
        // Predicated region
        $region21: #{neural_net_forward.1} parent=11 // pred_check
          %p168 = pneg %p100
        $region22: #{neural_net_forward.1} parent=11 // pred_check_branch
          %170 = sbr.rel (%p168) target = $region24
        $region23: #{neural_net_forward.1} parent=11 // pred_region
          _
        $region24: #{neural_net_forward.1} parent=11 // pred_fallthru
          _
        // Predicated region
        $region25: #{neural_net_forward.1} parent=11 // pred_check
          %p171 = pneg %p121
        $region26: #{neural_net_forward.1} parent=11 // pred_check_branch
          %173 = sbr.rel (%p171) target = $region28
        $region27: #{neural_net_forward.1} parent=11 // pred_region
          _
        $region28: #{neural_net_forward.1} parent=11 // pred_fallthru
          _
      $region12: #{neural_net_forward.1} parent=5 // pred_fallthru
        _
      %p174 = scmp.lt.s32.totalorder %s11, 2
      // Predicated region
      $region29: #{neural_net_forward.1} parent=5 // pred_check
        %p175 = pneg %p174
      $region30: #{neural_net_forward.1} parent=5 // pred_check_branch
        %177 = sbr.rel (%p175) target = $region32
      $region31: #{neural_net_forward.1} parent=5 // pred_region
        // Predicated region
        $region33: #{neural_net_forward.1} parent=31 // pred_check
          %p178 = pneg %p31
        $region34: #{neural_net_forward.1} parent=31 // pred_check_branch
          %180 = sbr.rel (%p178) target = $region36
        $region35: #{neural_net_forward.1} parent=31 // pred_region
          %s181 = smul.u32 3, %s11
          %s182 = ssub.s32 5, %s181
          %p183 = scmp.lt.s32.totalorder %s182, 3
          %s184 = scalar_select %p183, %s182, 3
          %s185 = smul.u32 128, %s184
          %s186 = smul.u32 %s185, 7
          %p187 = scmp.lt.s32.totalorder %s181, 4
          %s188 = scalar_select %p187, %s181, 4
          %s189 = smul.addr %s188, 7
          %s190 = smul.addr %s189, 8
          %s191 = scalar_lea.vmem %s0, %s190
          %s192 = smul.u32 3, %s11
          %s193 = ssub.s32 5, %s192
          %p194 = scmp.lt.s32.totalorder %s193, 3
          %s195 = scalar_select %p194, %s193, 3
          %s196 = smul.u32 128, %s195
          %s197 = smul.u32 %s196, 7
        $region36: #{neural_net_forward.1} parent=31 // pred_fallthru
          _
      $region32: #{neural_net_forward.1} parent=5 // pred_fallthru
        _
      %p198 = scmp.le.s32.totalorder 1, %s11
      %p199 = scmp.lt.s32.totalorder %s11, 3
      %p200 = pnand %p198, %p199
      %p201 = pneg %p200
      // Predicated region
      $region37: #{neural_net_forward.1} parent=5 // pred_check
        _
      $region38: #{neural_net_forward.1} parent=5 // pred_check_branch
        %203 = sbr.rel (%p200) target = $region40
      $region39: #{neural_net_forward.1} parent=5 // pred_region
        %s204 = ssub.s32 %s11, 1
        %s205 = smul.u32 3, %s16
        %s206 = ssub.s32 5, %s205
        %p207 = scmp.lt.s32.totalorder %s206, 3
        %s208 = scalar_select %p207, %s206, 3
        %s209 = smul.u32 128, %s208
        %s210 = smul.u32 %s209, 7
        %p211 = scmp.lt.s32.totalorder %s205, 4
        %s212 = scalar_select %p211, %s205, 4
        %s213 = smul.addr %s212, 7
        %s214 = smul.addr %s213, 8
        %s215 = scalar_lea.vmem %s0, %s214
        %p216 = pneg %p37
        %p217 = pneg %p34
        %p218 = pneg %p58
        %p219 = pneg %p55
        %p220 = pneg %p79
        %p221 = pneg %p76
        %p222 = pneg %p100
        %p223 = pneg %p97
        %p224 = pneg %p121
        %p225 = pneg %p118
        %p226 = pneg %p147
        %p227 = pneg %p144
        %s228 = sand.u32 %s134, 1
        %s229 = sand.u32 %s134, 1
        %s230 = smul.addr %s229, 24
        %s231 = scalar_lea.vmem [#allocation2], %s230
        %s232 = smul.u32 3, %s16
        %s233 = ssub.s32 5, %s232
        %p234 = scmp.lt.s32.totalorder %s233, 3
        %s235 = scalar_select %p234, %s233, 3
        %s236 = smul.u32 128, %s235
        %s237 = smul.u32 %s236, 7
        %p238 = scmp.lt.s32.totalorder %s232, 4
        %s239 = scalar_select %p238, %s232, 4
        %s240 = smul.addr %s239, 7
        %s241 = smul.addr %s240, 8
        %s242 = scalar_lea.vmem %s0, %s241
        %s243 = smul.u32 3, %s16
        %s244 = ssub.s32 5, %s243
        %p245 = scmp.lt.s32.totalorder %s244, 3
        %s246 = scalar_select %p245, %s244, 3
        %s247 = smul.u32 128, %s246
        %s248 = smul.u32 %s247, 7
        %s249 = smul.u32 3, %s16
        %s250 = ssub.s32 5, %s249
        %p251 = scmp.lt.s32.totalorder %s250, 3
        %s252 = scalar_select %p251, %s250, 3
        %s253 = smul.u32 128, %s252
        %v255 = vld [vmem:[%s242] sm:$0xff]
        %v256 = vld [vmem:[%s242 + $0x8] sm:$0xff]
        %v257 = vld [vmem:[%s242 + $0x10] sm:$0xff]
        %v258 = vld [vmem:[%s242 + $0x18] sm:$0xff]
        %v259 = vld [vmem:[%s242 + $0x20] sm:$0xff]
        %v260 = vld [vmem:[%s242 + $0x28] sm:$0xff]
        %v261 = vld [vmem:[%s242 + $0x30] sm:$0xff]
        %v262 = vld [vmem:[%s242 + $0x38] sm:$0xff]
        %v263 = vld [vmem:[%s242 + $0x40] sm:$0xff]
        %v264 = vld [vmem:[%s242 + $0x48] sm:$0xff]
        %v265 = vld [vmem:[%s242 + $0x50] sm:$0xff]
        %v266 = vld [vmem:[%s242 + $0x58] sm:$0xff]
        %v267 = vld [vmem:[%s242 + $0x60] sm:$0xff]
        %v268 = vld [vmem:[%s242 + $0x68] sm:$0xff]
        %v269 = vld [vmem:[%s242 + $0x70] sm:$0xff]
        %v270 = vld [vmem:[%s242 + $0x78] sm:$0xff]
        %v271 = vld [vmem:[%s242 + $0x80] sm:$0xff]
        %v272 = vld [vmem:[%s242 + $0x88] sm:$0xff]
        %v273 = vld [vmem:[%s242 + $0x90] sm:$0xff]
        %v274 = vld [vmem:[%s242 + $0x98] sm:$0xff]
        %v275 = vld [vmem:[%s242 + $0xa0] sm:$0xff]
        %v276 = vpack.c.bf16 %v262, %v255
        %v277 = vpack.c.bf16 %v263, %v256
        %v278 = vpack.c.bf16 %v264, %v257
        %v279 = vpack.c.bf16 %v265, %v258
        %v280 = vpack.c.bf16 %v266, %v259
        %v281 = vpack.c.bf16 %v267, %v260
        %v282 = vpack.c.bf16 %v268, %v261
        %v283 = vpack.c.bf16 %v269, %v269
        %v284 = vpack.c.bf16 %v270, %v270
        %v285 = vpack.c.bf16 %v271, %v271
        %v286 = vpack.c.bf16 %v272, %v272
        %v287 = vpack.c.bf16 %v273, %v273
        %v288 = vpack.c.bf16 %v274, %v274
        %v289 = vpack.c.bf16 %v275, %v275
        %v290 = vld [vmem:[%s1] sm:$0xf]
        %v291 = vld [vmem:[%s1 + $0x4] sm:$0xf]
        %v292 = vld [vmem:[%s1 + $0x8] sm:$0xf]
        %v293 = vld [vmem:[%s1 + $0xc] sm:$0xf]
        %v294 = vld [vmem:[%s1 + $0x10] sm:$0xf]
        %v295 = vld [vmem:[%s1 + $0x14] sm:$0xf]
        %v296 = vld [vmem:[%s1 + $0x18] sm:$0xf]
        %v297 = vld [vmem:[%s1 + $0x1c] sm:$0xf]
        %v298 = vld [vmem:[%s1 + $0x20] sm:$0xf]
        %v299 = vld [vmem:[%s1 + $0x24] sm:$0xf]
        %v300 = vld [vmem:[%s1 + $0x28] sm:$0xf]
        %v301 = vld [vmem:[%s1 + $0x2c] sm:$0xf]
        %v302 = vld [vmem:[%s1 + $0x30] sm:$0xf]
        %v303 = vld [vmem:[%s1 + $0x34] sm:$0xf]
        %v304 = vld [vmem:[%s1 + $0x38] sm:$0xf]
        %v305 = vld [vmem:[%s1 + $0x3c] sm:$0xf]
        %v306 = vld [vmem:[%s1 + $0x40] sm:$0xf]
        %v307 = vld [vmem:[%s1 + $0x44] sm:$0xf]
        %v308 = vld [vmem:[%s1 + $0x48] sm:$0xf]
        %v309 = vld [vmem:[%s1 + $0x4c] sm:$0xf]
        %v310 = vld [vmem:[%s1 + $0x50] sm:$0xf]
        %v311 = vld [vmem:[%s1 + $0x54] sm:$0xf]
        %v312 = vld [vmem:[%s1 + $0x58] sm:$0xf]
        %v313 = vld [vmem:[%s1 + $0x5c] sm:$0xf]
        %v314 = vld [vmem:[%s1 + $0x60] sm:$0xf]
        %v315 = vld [vmem:[%s1 + $0x64] sm:$0xf]
        %v316 = vld [vmem:[%s1 + $0x68] sm:$0xf]
        %v317 = vld [vmem:[%s1 + $0x6c] sm:$0xf]
        %v318 = vld [vmem:[%s1 + $0x70] sm:$0xf]
        %v319 = vld [vmem:[%s1 + $0x74] sm:$0xf]
        %v320 = vld [vmem:[%s1 + $0x78] sm:$0xf]
        %v321 = vld [vmem:[%s1 + $0x7c] sm:$0xf]
        %v322 = vld [vmem:[%s1 + $0x80] sm:$0xf]
        %v323 = vld [vmem:[%s1 + $0x84] sm:$0xf]
        %v324 = vld [vmem:[%s1 + $0x88] sm:$0xf]
        %v325 = vld [vmem:[%s1 + $0x8c] sm:$0xf]
        %v326 = vld [vmem:[%s1 + $0x90] sm:$0xf]
        %v327 = vld [vmem:[%s1 + $0x94] sm:$0xf]
        %v328 = vld [vmem:[%s1 + $0x98] sm:$0xf]
        %v329 = vld [vmem:[%s1 + $0x9c] sm:$0xf]
        %v330 = vld [vmem:[%s1 + $0xa0] sm:$0xf]
        %v331 = vld [vmem:[%s1 + $0xa4] sm:$0xf]
        %v332 = vld [vmem:[%s1 + $0xa8] sm:$0xf]
        %v333 = vld [vmem:[%s1 + $0xac] sm:$0xf]
        %v334 = vld [vmem:[%s1 + $0xb0] sm:$0xf]
        %v335 = vld [vmem:[%s1 + $0xb4] sm:$0xf]
        %v336 = vld [vmem:[%s1 + $0xb8] sm:$0xf]
        %v337 = vld [vmem:[%s1 + $0xbc] sm:$0xf]
        %v338 = vld [vmem:[%s1 + $0xc0] sm:$0xf]
        %v339 = vld [vmem:[%s1 + $0xc4] sm:$0xf]
        %v340 = vld [vmem:[%s1 + $0xc8] sm:$0xf]
        %v341 = vld [vmem:[%s1 + $0xcc] sm:$0xf]
        %v342 = vld [vmem:[%s1 + $0xd0] sm:$0xf]
        %v343 = vld [vmem:[%s1 + $0xd4] sm:$0xf]
        %v344 = vld [vmem:[%s1 + $0xd8] sm:$0xf]
        %v345 = vld [vmem:[%s1 + $0xdc] sm:$0xf]
        %v346 = vld [vmem:[%s1 + $0xe0] sm:$0xf]
        %v347 = vld [vmem:[%s1 + $0xe4] sm:$0xf]
        %v348 = vld [vmem:[%s1 + $0xe8] sm:$0xf]
        %v349 = vld [vmem:[%s1 + $0xec] sm:$0xf]
        %v350 = vld [vmem:[%s1 + $0xf0] sm:$0xf]
        %v351 = vld [vmem:[%s1 + $0xf4] sm:$0xf]
        %v352 = vld [vmem:[%s1 + $0xf8] sm:$0xf]
        %v353 = vld [vmem:[%s1 + $0xfc] sm:$0xf]
        %v354 = vld [vmem:[%s1 + $0x100] sm:$0xf]
        %v355 = vld [vmem:[%s1 + $0x104] sm:$0xf]
        %v356 = vld [vmem:[%s1 + $0x108] sm:$0xf]
        %v357 = vld [vmem:[%s1 + $0x10c] sm:$0xf]
        %v358 = vld [vmem:[%s1 + $0x110] sm:$0xf]
        %v359 = vld [vmem:[%s1 + $0x114] sm:$0xf]
        %v360 = vld [vmem:[%s1 + $0x118] sm:$0xf]
        %v361 = vld [vmem:[%s1 + $0x11c] sm:$0xf]
        %v362 = vld [vmem:[%s1 + $0x120] sm:$0xf]
        %v363 = vld [vmem:[%s1 + $0x124] sm:$0xf]
        %v364 = vld [vmem:[%s1 + $0x128] sm:$0xf]
        %v365 = vld [vmem:[%s1 + $0x12c] sm:$0xf]
        %v366 = vld [vmem:[%s1 + $0x130] sm:$0xf]
        %v367 = vld [vmem:[%s1 + $0x134] sm:$0xf]
        %v368 = vld [vmem:[%s1 + $0x138] sm:$0xf]
        %v369 = vld [vmem:[%s1 + $0x13c] sm:$0xf]
        %v370 = vld [vmem:[%s1 + $0x140] sm:$0xf]
        %v371 = vld [vmem:[%s1 + $0x144] sm:$0xf]
        %v372 = vld [vmem:[%s1 + $0x148] sm:$0xf]
        %v373 = vld [vmem:[%s1 + $0x14c] sm:$0xf]
        %v374 = vld [vmem:[%s1 + $0x150] sm:$0xf]
        %v375 = vld [vmem:[%s1 + $0x154] sm:$0xf]
        %v376 = vld [vmem:[%s1 + $0x158] sm:$0xf]
        %v377 = vld [vmem:[%s1 + $0x15c] sm:$0xf]
        %v378 = vld [vmem:[%s1 + $0x160] sm:$0xf]
        %v379 = vld [vmem:[%s1 + $0x164] sm:$0xf]
        %v380 = vld [vmem:[%s1 + $0x168] sm:$0xf]
        %v381 = vld [vmem:[%s1 + $0x16c] sm:$0xf]
        %v382 = vld [vmem:[%s1 + $0x170] sm:$0xf]
        %v383 = vld [vmem:[%s1 + $0x174] sm:$0xf]
        %v384 = vld [vmem:[%s1 + $0x178] sm:$0xf]
        %v385 = vld [vmem:[%s1 + $0x17c] sm:$0xf]
        %v386 = vld [vmem:[%s1 + $0x180] sm:$0xf]
        %v387 = vld [vmem:[%s1 + $0x184] sm:$0xf]
        %v388 = vld [vmem:[%s2] sm:$0x1]
        %v390 = vlaneseq
        %v391 = vshrl.u32 %v390, 7
        %v392 = vsub.s32 0, %v391
        %v393 = vrot.slane %v388, %v392
        %v493 = vunpack.c.l.b16 %v290
        %v494 = vunpack.c.l.b16 %v291
        %v495 = vunpack.c.l.b16 %v292
        %v496 = vunpack.c.l.b16 %v293
        %v497 = vunpack.c.l.b16 %v294
        %v498 = vunpack.c.l.b16 %v295
        %v499 = vunpack.c.l.b16 %v296
        %v500 = vunpack.c.l.b16 %v297
        %v501 = vunpack.c.l.b16 %v298
        %v502 = vunpack.c.l.b16 %v299
        %v503 = vunpack.c.l.b16 %v300
        %v504 = vunpack.c.l.b16 %v301
        %v505 = vunpack.c.l.b16 %v302
        %v506 = vunpack.c.l.b16 %v303
        %v507 = vunpack.c.l.b16 %v304
        %v508 = vunpack.c.l.b16 %v305
        %v509 = vunpack.c.l.b16 %v306
        %v510 = vunpack.c.l.b16 %v307
        %v511 = vunpack.c.l.b16 %v308
        %v512 = vunpack.c.l.b16 %v309
        %v513 = vunpack.c.l.b16 %v310
        %v514 = vunpack.c.l.b16 %v311
        %v515 = vunpack.c.l.b16 %v312
        %v516 = vunpack.c.l.b16 %v313
        %v517 = vunpack.c.l.b16 %v314
        %v518 = vunpack.c.l.b16 %v315
        %v519 = vunpack.c.l.b16 %v316
        %v520 = vunpack.c.l.b16 %v317
        %v521 = vunpack.c.l.b16 %v318
        %v522 = vunpack.c.l.b16 %v319
        %v523 = vunpack.c.l.b16 %v320
        %v524 = vunpack.c.l.b16 %v321
        %v525 = vunpack.c.l.b16 %v322
        %v526 = vunpack.c.l.b16 %v323
        %v527 = vunpack.c.l.b16 %v324
        %v528 = vunpack.c.l.b16 %v325
        %v529 = vunpack.c.l.b16 %v326
        %v530 = vunpack.c.l.b16 %v327
        %v531 = vunpack.c.l.b16 %v328
        %v532 = vunpack.c.l.b16 %v329
        %v533 = vunpack.c.l.b16 %v330
        %v534 = vunpack.c.l.b16 %v331
        %v535 = vunpack.c.l.b16 %v332
        %v536 = vunpack.c.l.b16 %v333
        %v537 = vunpack.c.l.b16 %v334
        %v538 = vunpack.c.l.b16 %v335
        %v539 = vunpack.c.l.b16 %v336
        %v540 = vunpack.c.l.b16 %v337
        %v541 = vunpack.c.l.b16 %v338
        %v542 = vunpack.c.l.b16 %v339
        %v543 = vunpack.c.l.b16 %v340
        %v544 = vunpack.c.l.b16 %v341
        %v545 = vunpack.c.l.b16 %v342
        %v546 = vunpack.c.l.b16 %v343
        %v547 = vunpack.c.l.b16 %v344
        %v548 = vunpack.c.l.b16 %v345
        %v549 = vunpack.c.l.b16 %v346
        %v550 = vunpack.c.l.b16 %v347
        %v551 = vunpack.c.l.b16 %v348
        %v552 = vunpack.c.l.b16 %v349
        %v553 = vunpack.c.l.b16 %v350
        %v554 = vunpack.c.l.b16 %v351
        %v555 = vunpack.c.l.b16 %v352
        %v556 = vunpack.c.l.b16 %v353
        %v557 = vunpack.c.l.b16 %v354
        %v558 = vunpack.c.l.b16 %v355
        %v559 = vunpack.c.l.b16 %v356
        %v560 = vunpack.c.l.b16 %v357
        %v561 = vunpack.c.l.b16 %v358
        %v562 = vunpack.c.l.b16 %v359
        %v563 = vunpack.c.l.b16 %v360
        %v564 = vunpack.c.l.b16 %v361
        %v565 = vunpack.c.l.b16 %v362
        %v566 = vunpack.c.l.b16 %v363
        %v567 = vunpack.c.l.b16 %v364
        %v568 = vunpack.c.l.b16 %v365
        %v569 = vunpack.c.l.b16 %v366
        %v570 = vunpack.c.l.b16 %v367
        %v571 = vunpack.c.l.b16 %v368
        %v572 = vunpack.c.l.b16 %v369
        %v573 = vunpack.c.l.b16 %v370
        %v574 = vunpack.c.l.b16 %v371
        %v575 = vunpack.c.l.b16 %v372
        %v576 = vunpack.c.l.b16 %v373
        %v577 = vunpack.c.l.b16 %v374
        %v578 = vunpack.c.l.b16 %v375
        %v579 = vunpack.c.l.b16 %v376
        %v580 = vunpack.c.l.b16 %v377
        %v581 = vunpack.c.l.b16 %v378
        %v582 = vunpack.c.l.b16 %v379
        %v583 = vunpack.c.l.b16 %v380
        %v584 = vunpack.c.l.b16 %v381
        %v585 = vunpack.c.l.b16 %v382
        %v586 = vunpack.c.l.b16 %v383
        %v587 = vunpack.c.l.b16 %v384
        %v588 = vunpack.c.l.b16 %v385
        %v589 = vunpack.c.l.b16 %v386
        %v590 = vunpack.c.l.b16 %v387
        %v591 = vpack.c.b16 %v494, %v493
        %v592 = vpack.c.b16 %v496, %v495
        %v593 = vpack.c.b16 %v498, %v497
        %v594 = vpack.c.b16 %v500, %v499
        %v595 = vpack.c.b16 %v502, %v501
        %v596 = vpack.c.b16 %v504, %v503
        %v597 = vpack.c.b16 %v506, %v505
        %v598 = vpack.c.b16 %v508, %v507
        %v599 = vpack.c.b16 %v510, %v509
        %v600 = vpack.c.b16 %v512, %v511
        %v601 = vpack.c.b16 %v514, %v513
        %v602 = vpack.c.b16 %v516, %v515
        %v603 = vpack.c.b16 %v518, %v517
        %v604 = vpack.c.b16 %v520, %v519
        %v605 = vpack.c.b16 %v522, %v521
        %v606 = vpack.c.b16 %v524, %v523
        %v607 = vpack.c.b16 %v526, %v525
        %v608 = vpack.c.b16 %v528, %v527
        %v609 = vpack.c.b16 %v530, %v529
        %v610 = vpack.c.b16 %v532, %v531
        %v611 = vpack.c.b16 %v534, %v533
        %v612 = vpack.c.b16 %v536, %v535
        %v613 = vpack.c.b16 %v538, %v537
        %v614 = vpack.c.b16 %v540, %v539
        %v615 = vpack.c.b16 %v542, %v541
        %v616 = vpack.c.b16 %v544, %v543
        %v617 = vpack.c.b16 %v546, %v545
        %v618 = vpack.c.b16 %v548, %v547
        %v619 = vpack.c.b16 %v550, %v549
        %v620 = vpack.c.b16 %v552, %v551
        %v621 = vpack.c.b16 %v554, %v553
        %v622 = vpack.c.b16 %v556, %v555
        %v623 = vpack.c.b16 %v558, %v557
        %v624 = vpack.c.b16 %v560, %v559
        %v625 = vpack.c.b16 %v562, %v561
        %v626 = vpack.c.b16 %v564, %v563
        %v627 = vpack.c.b16 %v566, %v565
        %v628 = vpack.c.b16 %v568, %v567
        %v629 = vpack.c.b16 %v570, %v569
        %v630 = vpack.c.b16 %v572, %v571
        %v631 = vpack.c.b16 %v574, %v573
        %v632 = vpack.c.b16 %v576, %v575
        %v633 = vpack.c.b16 %v578, %v577
        %v634 = vpack.c.b16 %v580, %v579
        %v635 = vpack.c.b16 %v582, %v581
        %v636 = vpack.c.b16 %v584, %v583
        %v637 = vpack.c.b16 %v586, %v585
        %v638 = vpack.c.b16 %v588, %v587
        %v639 = vpack.c.b16 %v590, %v589
        %vm689 = vcmask 130048
        %v691 = vsel %vm689, %v282, 0
        %v694 = vsel %vm689, %v289, 0
        %696 = vmatprep.subr.bf16.mxu0 0
        %697 = vmatpush1.bf16.msra.mxu0 %v591
        %698 = vmatprep.subr.bf16.mxu0 0
        %699 = vmatpush1.bf16.msra.mxu0 %v592
        %700 = vmatprep.subr.bf16.mxu0 0
        %701 = vmatpush1.bf16.msra.mxu0 %v593
        %702 = vmatprep.subr.bf16.mxu0 0
        %703 = vmatpush1.bf16.msra.mxu0 %v594
        %704 = vmatprep.subr.bf16.mxu0 0
        %705 = vmatpush1.bf16.msra.mxu0 %v595
        %706 = vmatprep.subr.bf16.mxu0 0
        %707 = vmatpush1.bf16.msra.mxu0 %v596
        %708 = vmatprep.subr.bf16.mxu0 0
        %709 = vmatpush1.bf16.msra.mxu0 %v597
        %710 = vmatprep.subr.bf16.mxu0 0
        %711 = vmatpush1.bf16.msra.mxu0 %v598
        %712 = vmatprep.subr.bf16.mxu0 0
        %713 = vmatpush1.bf16.msra.mxu0 %v599
        %714 = vmatprep.subr.bf16.mxu0 0
        %715 = vmatpush1.bf16.msra.mxu0 %v600
        %716 = vmatprep.subr.bf16.mxu0 0
        %717 = vmatpush1.bf16.msra.mxu0 %v601
        %718 = vmatprep.subr.bf16.mxu0 0
        %719 = vmatpush1.bf16.msra.mxu0 %v602
        %720 = vmatprep.subr.bf16.mxu0 0
        %721 = vmatpush1.bf16.msra.mxu0 %v603
        %722 = vmatprep.subr.bf16.mxu0 0
        %723 = vmatpush1.bf16.msra.mxu0 %v604
        %724 = vmatprep.subr.bf16.mxu0 0
        %725 = vmatpush1.bf16.msra.mxu0 %v605
        %726 = vmatprep.subr.bf16.mxu0 0
        %727 = vmatpush1.bf16.msra.mxu0 %v606
        %728 = vmatprep.mubr.bf16.mxu0 %v277
        %729 = vmatmul.mubr.bf16.gmra.mrb[0].mxu0 %v276
        %v730 = vpop.f32.mrb[0].mxu0
        %v731 = vadd.f32 %v393, %v730
        %v732 = vpop.f32.mrb[0].mxu0
        %v733 = vpop.f32.mrb[0].mxu0
        %v734 = vadd.f32 %v393, %v733
        %v735 = vpop.f32.mrb[0].mxu0
        %736 = vmatprep.mubr.bf16.mxu0 %v284
        %737 = vmatmul.mubr.bf16.gmra.mrb[0].mxu0 %v283
        %v738 = vpop.f32.mrb[0].mxu0
        %v739 = vadd.f32 %v393, %v738
        %v740 = vpop.f32.mrb[0].mxu0
        %v741 = vpop.f32.mrb[0].mxu0
        %v742 = vpop.f32.mrb[0].mxu0
        %743 = vdwg.mxu0
        %744 = vmatprep.subr.bf16.mxu0 0
        %745 = vmatpush1.bf16.msra.mxu0 %v607
        %746 = vmatprep.subr.bf16.mxu0 0
        %747 = vmatpush1.bf16.msra.mxu0 %v608
        %748 = vmatprep.subr.bf16.mxu0 0
        %749 = vmatpush1.bf16.msra.mxu0 %v609
        %750 = vmatprep.subr.bf16.mxu0 0
        %751 = vmatpush1.bf16.msra.mxu0 %v610
        %752 = vmatprep.subr.bf16.mxu0 0
        %753 = vmatpush1.bf16.msra.mxu0 %v611
        %754 = vmatprep.subr.bf16.mxu0 0
        %755 = vmatpush1.bf16.msra.mxu0 %v612
        %756 = vmatprep.subr.bf16.mxu0 0
        %757 = vmatpush1.bf16.msra.mxu0 %v613
        %758 = vmatprep.subr.bf16.mxu0 0
        %759 = vmatpush1.bf16.msra.mxu0 %v614
        %760 = vmatprep.subr.bf16.mxu0 0
        %761 = vmatpush1.bf16.msra.mxu0 %v615
        %762 = vmatprep.subr.bf16.mxu0 0
        %763 = vmatpush1.bf16.msra.mxu0 %v616
        %764 = vmatprep.subr.bf16.mxu0 0
        %765 = vmatpush1.bf16.msra.mxu0 %v617
        %766 = vmatprep.subr.bf16.mxu0 0
        %767 = vmatpush1.bf16.msra.mxu0 %v618
        %768 = vmatprep.subr.bf16.mxu0 0
        %769 = vmatpush1.bf16.msra.mxu0 %v619
        %770 = vmatprep.subr.bf16.mxu0 0
        %771 = vmatpush1.bf16.msra.mxu0 %v620
        %772 = vmatprep.subr.bf16.mxu0 0
        %773 = vmatpush1.bf16.msra.mxu0 %v621
        %774 = vmatprep.subr.bf16.mxu0 0
        %775 = vmatpush1.bf16.msra.mxu0 %v622
        %776 = vmatprep.mubr.bf16.mxu0 %v279
        %777 = vmatmul.mubr.bf16.gmra.mrb[0].mxu0 %v278
        %v778 = vpop.f32.mrb[0].mxu0
        %v779 = vadd.f32 %v731, %v778
        %v780 = vpop.f32.mrb[0].mxu0
        %v781 = vpop.f32.mrb[0].mxu0
        %v782 = vadd.f32 %v734, %v781
        %v783 = vpop.f32.mrb[0].mxu0
        %784 = vmatprep.mubr.bf16.mxu0 %v286
        %785 = vmatmul.mubr.bf16.gmra.mrb[0].mxu0 %v285
        %v786 = vpop.f32.mrb[0].mxu0
        %v787 = vadd.f32 %v739, %v786
        %v788 = vpop.f32.mrb[0].mxu0
        %v789 = vpop.f32.mrb[0].mxu0
        %v790 = vpop.f32.mrb[0].mxu0
        %791 = vdwg.mxu0
        %792 = vmatprep.subr.bf16.mxu0 0
        %793 = vmatpush1.bf16.msra.mxu0 %v623
        %794 = vmatprep.subr.bf16.mxu0 0
        %795 = vmatpush1.bf16.msra.mxu0 %v624
        %796 = vmatprep.subr.bf16.mxu0 0
        %797 = vmatpush1.bf16.msra.mxu0 %v625
        %798 = vmatprep.subr.bf16.mxu0 0
        %799 = vmatpush1.bf16.msra.mxu0 %v626
        %800 = vmatprep.subr.bf16.mxu0 0
        %801 = vmatpush1.bf16.msra.mxu0 %v627
        %802 = vmatprep.subr.bf16.mxu0 0
        %803 = vmatpush1.bf16.msra.mxu0 %v628
        %804 = vmatprep.subr.bf16.mxu0 0
        %805 = vmatpush1.bf16.msra.mxu0 %v629
        %806 = vmatprep.subr.bf16.mxu0 0
        %807 = vmatpush1.bf16.msra.mxu0 %v630
        %808 = vmatprep.subr.bf16.mxu0 0
        %809 = vmatpush1.bf16.msra.mxu0 %v631
        %810 = vmatprep.subr.bf16.mxu0 0
        %811 = vmatpush1.bf16.msra.mxu0 %v632
        %812 = vmatprep.subr.bf16.mxu0 0
        %813 = vmatpush1.bf16.msra.mxu0 %v633
        %814 = vmatprep.subr.bf16.mxu0 0
        %815 = vmatpush1.bf16.msra.mxu0 %v634
        %816 = vmatprep.subr.bf16.mxu0 0
        %817 = vmatpush1.bf16.msra.mxu0 %v635
        %818 = vmatprep.subr.bf16.mxu0 0
        %819 = vmatpush1.bf16.msra.mxu0 %v636
        %820 = vmatprep.subr.bf16.mxu0 0
        %821 = vmatpush1.bf16.msra.mxu0 %v637
        %822 = vmatprep.subr.bf16.mxu0 0
        %823 = vmatpush1.bf16.msra.mxu0 %v638
        %824 = vmatprep.mubr.bf16.mxu0 %v281
        %825 = vmatmul.mubr.bf16.gmra.mrb[0].mxu0 %v280
        %v826 = vpop.f32.mrb[0].mxu0
        %v827 = vadd.f32 %v779, %v826
        %v828 = vpop.f32.mrb[0].mxu0
        %v829 = vpop.f32.mrb[0].mxu0
        %v830 = vadd.f32 %v782, %v829
        %v831 = vpop.f32.mrb[0].mxu0
        %832 = vmatprep.mubr.bf16.mxu0 %v288
        %833 = vmatmul.mubr.bf16.gmra.mrb[0].mxu0 %v287
        %v834 = vpop.f32.mrb[0].mxu0
        %v835 = vadd.f32 %v787, %v834
        %v836 = vpop.f32.mrb[0].mxu0
        %v837 = vpop.f32.mrb[0].mxu0
        %v838 = vpop.f32.mrb[0].mxu0
        %839 = vdwg.mxu0
        %840 = vmatprep.subr.bf16.mxu0 0
        %841 = vmatpush1.bf16.msra.mxu0 %v639
        %842 = vmatprep.subr.bf16.mxu0 0
        %843 = vmatpush1.bf16.msra.mxu0 0
        %844 = vmatprep.subr.bf16.mxu0 0
        %845 = vmatpush1.bf16.msra.mxu0 0
        %846 = vmatprep.subr.bf16.mxu0 0
        %847 = vmatpush1.bf16.msra.mxu0 0
        %848 = vmatprep.subr.bf16.mxu0 0
        %849 = vmatpush1.bf16.msra.mxu0 0
        %850 = vmatprep.subr.bf16.mxu0 0
        %851 = vmatpush1.bf16.msra.mxu0 0
        %852 = vmatprep.subr.bf16.mxu0 0
        %853 = vmatpush1.bf16.msra.mxu0 0
        %854 = vmatprep.subr.bf16.mxu0 0
        %855 = vmatpush1.bf16.msra.mxu0 0
        %856 = vmatprep.subr.bf16.mxu0 0
        %857 = vmatpush1.bf16.msra.mxu0 0
        %858 = vmatprep.subr.bf16.mxu0 0
        %859 = vmatpush1.bf16.msra.mxu0 0
        %860 = vmatprep.subr.bf16.mxu0 0
        %861 = vmatpush1.bf16.msra.mxu0 0
        %862 = vmatprep.subr.bf16.mxu0 0
        %863 = vmatpush1.bf16.msra.mxu0 0
        %864 = vmatprep.subr.bf16.mxu0 0
        %865 = vmatpush1.bf16.msra.mxu0 0
        %866 = vmatprep.subr.bf16.mxu0 0
        %867 = vmatpush1.bf16.msra.mxu0 0
        %868 = vmatprep.subr.bf16.mxu0 0
        %869 = vmatpush1.bf16.msra.mxu0 0
        %870 = vmatprep.subr.bf16.mxu0 0
        %871 = vmatpush1.bf16.msra.mxu0 0
        %872 = vmatprep.mubr.bf16.mxu0 0
        %873 = vmatmul.mubr.bf16.gmra.mrb[0].mxu0 %v691
        %v874 = vpop.f32.mrb[0].mxu0
        %v875 = vadd.f32 %v827, %v874
        %v876 = vpop.f32.mrb[0].mxu0
        %v877 = vpop.f32.mrb[0].mxu0
        %v878 = vadd.f32 %v830, %v877
        %v879 = vpop.f32.mrb[0].mxu0
        %880 = vmatprep.mubr.bf16.mxu0 0
        %881 = vmatmul.mubr.bf16.gmra.mrb[0].mxu0 %v694
        %v882 = vpop.f32.mrb[0].mxu0
        %v883 = vadd.f32 %v835, %v882
        %v884 = vpop.f32.mrb[0].mxu0
        %v885 = vpop.f32.mrb[0].mxu0
        %v886 = vpop.f32.mrb[0].mxu0
        %887 = vdwg.mxu0
        %v888 = vmax.f32 %v875, 0.0
        %v889 = vmax.f32 %v878, 0.0
        %v890 = vmax.f32 %v883, 0.0
        %v891 = vpack.c.bf16 %v889, %v888
        %v892 = vpack.c.bf16 %v890, %v890
        %v893 = vld [vmem:[%s3] sm:$0xf]
        %v894 = vld [vmem:[%s3 + $0x4] sm:$0xf]
        %v895 = vld [vmem:[%s3 + $0x8] sm:$0xf]
        %v896 = vld [vmem:[%s3 + $0xc] sm:$0xf]
        %v897 = vld [vmem:[%s4] sm:$0x1]
        %v899 = vlaneseq
        %v900 = vshrl.u32 %v899, 7
        %v901 = vsub.s32 0, %v900
        %v902 = vrot.slane %v897, %v901
        %v908 = vunpack.c.l.b16 %v893
        %v909 = vunpack.c.l.b16 %v894
        %v910 = vunpack.c.l.b16 %v895
        %v911 = vunpack.c.l.b16 %v896
        %v912 = vpack.c.b16 %v909, %v908
        %v913 = vpack.c.b16 %v911, %v910
        %vm916 = vcmask 261120
        %v918 = vsel %vm916, %v891, 0
        %v921 = vsel %vm916, %v892, 0
        %923 = vmatprep.subr.bf16.mxu0 0
        %924 = vmatpush1.bf16.msra.mxu0 %v912
        %925 = vmatprep.subr.bf16.mxu0 0
        %926 = vmatpush1.bf16.msra.mxu0 %v913
        %927 = vmatprep.subr.bf16.mxu0 0
        %928 = vmatpush1.bf16.msra.mxu0 0
        %929 = vmatprep.subr.bf16.mxu0 0
        %930 = vmatpush1.bf16.msra.mxu0 0
        %931 = vmatprep.subr.bf16.mxu0 0
        %932 = vmatpush1.bf16.msra.mxu0 0
        %933 = vmatprep.subr.bf16.mxu0 0
        %934 = vmatpush1.bf16.msra.mxu0 0
        %935 = vmatprep.subr.bf16.mxu0 0
        %936 = vmatpush1.bf16.msra.mxu0 0
        %937 = vmatprep.subr.bf16.mxu0 0
        %938 = vmatpush1.bf16.msra.mxu0 0
        %939 = vmatprep.subr.bf16.mxu0 0
        %940 = vmatpush1.bf16.msra.mxu0 0
        %941 = vmatprep.subr.bf16.mxu0 0
        %942 = vmatpush1.bf16.msra.mxu0 0
        %943 = vmatprep.subr.bf16.mxu0 0
        %944 = vmatpush1.bf16.msra.mxu0 0
        %945 = vmatprep.subr.bf16.mxu0 0
        %946 = vmatpush1.bf16.msra.mxu0 0
        %947 = vmatprep.subr.bf16.mxu0 0
        %948 = vmatpush1.bf16.msra.mxu0 0
        %949 = vmatprep.subr.bf16.mxu0 0
        %950 = vmatpush1.bf16.msra.mxu0 0
        %951 = vmatprep.subr.bf16.mxu0 0
        %952 = vmatpush1.bf16.msra.mxu0 0
        %953 = vmatprep.subr.bf16.mxu0 0
        %954 = vmatpush1.bf16.msra.mxu0 0
        %955 = vmatprep.mubr.bf16.mxu0 0
        %956 = vmatmul.mubr.bf16.gmra.mrb[0].mxu0 %v918
        %v957 = vpop.f32.mrb[0].mxu0
        %v958 = vadd.f32 %v902, %v957
        %v959 = vpop.f32.mrb[0].mxu0
        %v960 = vpop.f32.mrb[0].mxu0
        %v961 = vadd.f32 %v902, %v960
        %v962 = vpop.f32.mrb[0].mxu0
        %963 = vmatprep.mubr.bf16.mxu0 0
        %964 = vmatmul.mubr.bf16.gmra.mrb[0].mxu0 %v921
        %v965 = vpop.f32.mrb[0].mxu0
        %v966 = vadd.f32 %v902, %v965
        %v967 = vpop.f32.mrb[0].mxu0
        %v968 = vpop.f32.mrb[0].mxu0
        %v969 = vpop.f32.mrb[0].mxu0
        %970 = vdwg.mxu0
        %vm971 = vcmask 80896
        %972 = vst.msk [vmem:[%s231] sm:$0xff] %vm971, %v958
        %973 = vst.msk [vmem:[%s231 + $0x8] sm:$0xff] %vm971, %v961
        %974 = vst.msk [vmem:[%s231 + $0x10] sm:$0xff] %vm971, %v966
        %s975 = sand.u32 %s134, 1
        %s976 = sand.u32 %s134, 1
        %s977 = smul.addr %s976, 24
        %s978 = scalar_lea.vmem [#allocation2], %s977
        // Predicated region
        $region41: #{neural_net_forward.1} parent=39 // pred_check
          %p979 = pneg %p144
        $region42: #{neural_net_forward.1} parent=39 // pred_check_branch
          %981 = sbr.rel (%p979) target = $region44
        $region43: #{neural_net_forward.1} parent=39 // pred_region
          %s982 = smul.u32 3, %s16
          %s983 = ssub.s32 5, %s982
          %p984 = scmp.lt.s32.totalorder %s983, 3
          %s985 = scalar_select %p984, %s983, 3
          %s986 = smul.u32 128, %s985
          %p987 = scmp.ne.s32.totalorder 0, %s986
          %s988 = smul.addr %s982, 8
          %s989 = scalar_lea.vmem %s5, %s988
          // Predicated region
          $region45: #{neural_net_forward.1} parent=43 // pred_check
            %p990 = pneg %p987
          $region46: #{neural_net_forward.1} parent=43 // pred_check_branch
            %992 = sbr.rel (%p990) target = $region48
          $region47: #{neural_net_forward.1} parent=43 // pred_region
            // Predicated region
            $region49: #{neural_net_forward.1} parent=47 // pred_check
              _
            $region50: #{neural_net_forward.1} parent=47 // pred_check_branch
              %994 = sbr.rel (0) target = $region52
            $region51: #{neural_net_forward.1} parent=47 // pred_region
              // Predicated region
              $region71: #{neural_net_forward.1} parent=51 // pred_check
                _
              $region72: #{neural_net_forward.1} parent=51 // pred_check_branch
                %1048 = sbr.rel (0) target = $region74
              $region73: #{neural_net_forward.1} parent=51 // pred_region
                %s1049 = sdiv.u32.pop %s985, 3
                %s1050 = srem.u32.pop %s985, 3
                // While loop
                $region75: #{neural_net_forward.1} parent=73 // loop_pre_header
                  _
                $region76: #{neural_net_forward.1} parent=73 // loop_header
                  %s1052 = sphi 0, %s1054
                  %p1053 = scmp.ge.s32.totalorder %s1052, %s1049
                  %s1057 = sphi 0, %s1068
                  %s1058 = sphi %s978, %s1071
                  %s1059 = sphi %s989, %s1072
                $region77: #{neural_net_forward.1} parent=73 // loop_header_branch
                  %1056 = sbr.rel (%p1053) target = $region81
                $region78: #{neural_net_forward.1} parent=73 // loop_body
                  %v1060 = vld [vmem:[%s1058] sm:$0xff]
                  %1061 = vst [vmem:[%s1059] sm:$0xff] %v1060
                  %v1062 = vld [vmem:[%s1058 + $0x8] sm:$0xff]
                  %1063 = vst [vmem:[%s1059 + $0x8] sm:$0xff] %v1062
                  %v1064 = vld [vmem:[%s1058 + $0x10] sm:$0xff]
                  %1065 = vst [vmem:[%s1059 + $0x10] sm:$0xff] %v1064
                  %s1066 = sadd.s32 1, %s1057
                  %p1067 = scmp.ge.s32.totalorder %s1066, %s1049
                  %s1068 = scalar_select %p1067, 0, %s1066
                  %s1069 = smul.u32 %s1068, 24
                  %s1070 = smul.u32 %s1068, 24
                  %s1071 = scalar_lea.vmem %s978, %s1069 [#allocation2]
                  %s1072 = scalar_lea.vmem %s989, %s1070
                $region79: #{neural_net_forward.1} parent=73 // loop_footer
                  %s1054 = sadd.s32 %s1052, 1
                $region80: #{neural_net_forward.1} parent=73 // loop_footer_branch
                  %1051 = sbr.rel target = $region76
                $region81: #{neural_net_forward.1} parent=73 // loop_exit
                  _
                %s1073 = sdiv.u32.pop %s985, 3
                %s1074 = srem.u32.pop %s985, 3
                %s1075 = smul.u32 %s1073, 3
                %s1076 = smul.u32 8, %s1075
                %s1077 = scalar_lea.vmem %s978, %s1076 [#allocation2]
                %s1078 = smul.u32 8, %s1075
                %s1079 = scalar_lea.vmem %s989, %s1078
                // While loop
                $region82: #{neural_net_forward.1} parent=73 // loop_pre_header
                  _
                $region83: #{neural_net_forward.1} parent=73 // loop_header
                  %s1081 = sphi 0, %s1083
                  %p1082 = scmp.ge.s32.totalorder %s1081, %s1074
                  %s1086 = sphi 0, %s1093
                  %s1087 = sphi %s1077, %s1096
                  %s1088 = sphi %s1079, %s1097
                $region84: #{neural_net_forward.1} parent=73 // loop_header_branch
                  %1085 = sbr.rel (%p1082) target = $region88
                $region85: #{neural_net_forward.1} parent=73 // loop_body
                  %v1089 = vld [vmem:[%s1087] sm:$0xff]
                  %1090 = vst [vmem:[%s1088] sm:$0xff] %v1089
                  %s1091 = sadd.s32 1, %s1086
                  %p1092 = scmp.ge.s32.totalorder %s1091, %s1074
                  %s1093 = scalar_select %p1092, 0, %s1091
                  %s1094 = smul.u32 %s1093, 8
                  %s1095 = smul.u32 %s1093, 8
                  %s1096 = scalar_lea.vmem %s1077, %s1094 [#allocation2]
                  %s1097 = scalar_lea.vmem %s1079, %s1095
                $region86: #{neural_net_forward.1} parent=73 // loop_footer
                  %s1083 = sadd.s32 %s1081, 1
                $region87: #{neural_net_forward.1} parent=73 // loop_footer_branch
                  %1080 = sbr.rel target = $region83
                $region88: #{neural_net_forward.1} parent=73 // loop_exit
                  _
              $region74: #{neural_net_forward.1} parent=51 // pred_fallthru
                _
              // Predicated region
              $region89: #{neural_net_forward.1} parent=51 // pred_check
                _
              $region90: #{neural_net_forward.1} parent=51 // pred_check_branch
                %1099 = sbr.rel target = $region92
              $region91: #{neural_net_forward.1} parent=51 // pred_region
                _
              $region92: #{neural_net_forward.1} parent=51 // pred_fallthru
                _
            $region52: #{neural_net_forward.1} parent=47 // pred_fallthru
              _
            // Predicated region
            $region53: #{neural_net_forward.1} parent=47 // pred_check
              _
            $region54: #{neural_net_forward.1} parent=47 // pred_check_branch
              %996 = sbr.rel target = $region56
            $region55: #{neural_net_forward.1} parent=47 // pred_region
              %s998 = sdiv.u32.pop %s985, 3
              %s999 = srem.u32.pop %s985, 3
              // While loop
              $region57: #{neural_net_forward.1} parent=55 // loop_pre_header
                _
              $region58: #{neural_net_forward.1} parent=55 // loop_header
                %s1001 = sphi 0, %s1003
                %p1002 = scmp.ge.s32.totalorder %s1001, %s998
                %s1006 = sphi 0, %s1017
                %s1007 = sphi %s978, %s1020
                %s1008 = sphi %s989, %s1021
              $region59: #{neural_net_forward.1} parent=55 // loop_header_branch
                %1005 = sbr.rel (%p1002) target = $region63
              $region60: #{neural_net_forward.1} parent=55 // loop_body
                %v1009 = vld [vmem:[%s1007] sm:$0xff]
                %1010 = vst [vmem:[%s1008] sm:$0xff] %v1009
                %v1011 = vld [vmem:[%s1007 + $0x8] sm:$0xff]
                %1012 = vst [vmem:[%s1008 + $0x8] sm:$0xff] %v1011
                %v1013 = vld [vmem:[%s1007 + $0x10] sm:$0xff]
                %1014 = vst [vmem:[%s1008 + $0x10] sm:$0xff] %v1013
                %s1015 = sadd.s32 1, %s1006
                %p1016 = scmp.ge.s32.totalorder %s1015, %s998
                %s1017 = scalar_select %p1016, 0, %s1015
                %s1018 = smul.u32 %s1017, 24
                %s1019 = smul.u32 %s1017, 24
                %s1020 = scalar_lea.vmem %s978, %s1018 [#allocation2]
                %s1021 = scalar_lea.vmem %s989, %s1019
              $region61: #{neural_net_forward.1} parent=55 // loop_footer
                %s1003 = sadd.s32 %s1001, 1
              $region62: #{neural_net_forward.1} parent=55 // loop_footer_branch
                %1000 = sbr.rel target = $region58
              $region63: #{neural_net_forward.1} parent=55 // loop_exit
                _
              %s1022 = sdiv.u32.pop %s985, 3
              %s1023 = srem.u32.pop %s985, 3
              %s1024 = smul.u32 %s1022, 3
              %s1025 = smul.u32 8, %s1024
              %s1026 = scalar_lea.vmem %s978, %s1025 [#allocation2]
              %s1027 = smul.u32 8, %s1024
              %s1028 = scalar_lea.vmem %s989, %s1027
              // While loop
              $region64: #{neural_net_forward.1} parent=55 // loop_pre_header
                _
              $region65: #{neural_net_forward.1} parent=55 // loop_header
                %s1030 = sphi 0, %s1032
                %p1031 = scmp.ge.s32.totalorder %s1030, %s1023
                %s1035 = sphi 0, %s1042
                %s1036 = sphi %s1026, %s1045
                %s1037 = sphi %s1028, %s1046
              $region66: #{neural_net_forward.1} parent=55 // loop_header_branch
                %1034 = sbr.rel (%p1031) target = $region70
              $region67: #{neural_net_forward.1} parent=55 // loop_body
                %v1038 = vld [vmem:[%s1036] sm:$0xff]
                %1039 = vst [vmem:[%s1037] sm:$0xff] %v1038
                %s1040 = sadd.s32 1, %s1035
                %p1041 = scmp.ge.s32.totalorder %s1040, %s1023
                %s1042 = scalar_select %p1041, 0, %s1040
                %s1043 = smul.u32 %s1042, 8
                %s1044 = smul.u32 %s1042, 8
                %s1045 = scalar_lea.vmem %s1026, %s1043 [#allocation2]
                %s1046 = scalar_lea.vmem %s1028, %s1044
              $region68: #{neural_net_forward.1} parent=55 // loop_footer
                %s1032 = sadd.s32 %s1030, 1
              $region69: #{neural_net_forward.1} parent=55 // loop_footer_branch
                %1029 = sbr.rel target = $region65
              $region70: #{neural_net_forward.1} parent=55 // loop_exit
                _
            $region56: #{neural_net_forward.1} parent=47 // pred_fallthru
              _
          $region48: #{neural_net_forward.1} parent=43 // pred_fallthru
            _
          %1100 = vnop
        $region44: #{neural_net_forward.1} parent=39 // pred_fallthru
          _
      $region40: #{neural_net_forward.1} parent=5 // pred_fallthru
        _
      %p1101 = scmp.le.s32.totalorder 2, %s11
      // Predicated region
      $region93: #{neural_net_forward.1} parent=5 // pred_check
        %p1102 = pneg %p1101
      $region94: #{neural_net_forward.1} parent=5 // pred_check_branch
        %1104 = sbr.rel (%p1102) target = $region96
      $region95: #{neural_net_forward.1} parent=5 // pred_region
        %s1105 = ssub.s32 %s11, 2
        // Predicated region
        $region97: #{neural_net_forward.1} parent=95 // pred_check
          %p1106 = pneg %p150
        $region98: #{neural_net_forward.1} parent=95 // pred_check_branch
          %1108 = sbr.rel (%p1106) target = $region100
        $region99: #{neural_net_forward.1} parent=95 // pred_region
          %s1109 = sand.u32 %s135, 1
          %s1110 = sand.u32 %s135, 1
          %s1111 = smul.addr %s1110, 24
          %s1112 = scalar_lea.vmem [#allocation2], %s1111
        $region100: #{neural_net_forward.1} parent=95 // pred_fallthru
          _
      $region96: #{neural_net_forward.1} parent=5 // pred_fallthru
        _
    $region6: #{neural_net_forward.1} parent=1 // loop_footer
      %s15 = sadd.s32 1, %s11
    $region7: #{neural_net_forward.1} parent=1 // loop_footer_branch
      %10 = sbr.rel target = $region3
    $region8: #{neural_net_forward.1} parent=1 // loop_exit
      _

</llo_original>
